<compile_context>
chip_gen: v7x
topology: tpu7x:2x2x1
jax: 0.10.0
libtpu: 0.0.40
codegen_flags: <defaults>
</compile_context>

<pallas_src>
import math

import jax
import jax.numpy as jnp
from jax.experimental import pallas as pl
from jax.experimental.pallas import tpu as pltpu


def _round_up(x, m):
    return ((x + m - 1) // m) * m


def _cdiv(a, b):
    return -(-a // b)


def _default_num_cores():
    """1 TensorCore per device on v5e/v6e; 2 on megacore chips (v4/v5p/v7x)."""
    try:
        kind = jax.devices()[0].device_kind.lower()
    except Exception:
        return 1
    if "v7" in kind or "v4" in kind or "v5p" in kind:
        return 2
    return 1


def _default_vmem_limit():
    try:
        phys = getattr(pltpu.get_tpu_info(), "vmem_capacity_bytes", 64 * 1024 * 1024)
    except Exception:
        phys = 64 * 1024 * 1024
    # ~75% of physical, capped at 100 MiB: v5e/v6e (128 MiB) -> 96 MiB, v7x (64 MiB) -> 48 MiB.
    return int(min((phys * 3) // 4, 100 * 1024 * 1024))


def _nmse_kernel(p_ref, g_ref, scale_ref, out_ref, acc_ref):
    j = pl.program_id(1)

    @pl.when(j == 0)
    def _():
        acc_ref[...] = jnp.zeros_like(acc_ref)

    # (tile_r, C) in f32 regardless of the streamed dtype (bf16 rides for free).
    d = p_ref[...].astype(jnp.float32) - g_ref[...].astype(jnp.float32)
    # Per-lane weight * inverse variance (resident, broadcast over sublanes),
    # then a lane-axis reduction on the VPU/XLU -- no MXU involved.
    contrib = d * d * scale_ref[...]
    acc_ref[...] += jnp.sum(contrib, axis=1, keepdims=True)          # (tile_r, 1)

    @pl.when(j == pl.num_programs(1) - 1)
    def _():
        partial = jnp.sum(acc_ref[...], axis=0, keepdims=True)       # (1, 1)
        out_ref[...] = jnp.broadcast_to(partial, out_ref.shape)      # aligned (8,128) write


def normalized_mse_loss(predictions, ground_truth, feature_variance, weights,
                        at=None, n_cores=None, vmem_limit_bytes=None,
                        max_tile_rows=None):
    """predictions/ground_truth: (B,T,N,F) or (B,N,F); weights: (N,); feature_variance: (F,)."""
    if predictions.ndim == 3:
        predictions = predictions[:, None]
        ground_truth = ground_truth[:, None]
    predicted_steps = predictions.shape[1]
    ground_truth = ground_truth[:, :predicted_steps]
    if at is not None:
        idx = predicted_steps - 1 if at >= predicted_steps else at
        predictions = predictions[:, idx][:, None]
        ground_truth = ground_truth[:, idx][:, None]
    # TODO(synk): the `variables != 'all'` feature-subset path (column gather) is not implemented.

    B, T, N, F = predictions.shape
    M = B * T * N
    E = M * F

    if n_cores is None:
        n_cores = _default_num_cores()
    if vmem_limit_bytes is None:
        vmem_limit_bytes = _default_vmem_limit()

    # Lane-dense minor dim: smallest multiple of the scale period N*F that is
    # also a multiple of 128 lanes.
    period = N * F
    q = 128 // math.gcd(128, period)
    C = period * q
    # TODO(synk): for extremely large N*F (one row of C f32 exceeding the VMEM
    # budget) the lane axis would also need tiling; not needed at these shapes.

    # Resident per-lane scale: scale[c] = w[(c // F) mod N] / fv[c mod F]^2.
    fv = feature_variance.reshape(F).astype(jnp.float32)
    inv_fv2 = 1.0 / (fv * fv)
    w = weights.reshape(N).astype(jnp.float32)
    scale = jnp.tile((w[:, None] * inv_fv2[None, :]).reshape(period), q).reshape(1, C)

    # Tile/grid sizing from the per-generation VMEM budget (native dtype streamed).
    itemsize = max(jnp.dtype(predictions.dtype).itemsize,
                   jnp.dtype(ground_truth.dtype).itemsize)
    rows_needed = _cdiv(E, C)
    rows_per_core = _cdiv(rows_needed, n_cores)
    resident = C * 4 + n_cores * 8 * 128 * 4                  # scale + output partials
    input_budget = max(vmem_limit_bytes - resident - 4 * 1024 * 1024, 2 * 1024 * 1024)
    per_row = 4 * C * itemsize + 128 * 4                      # 2 inputs x double-buffer + acc row
    tile_r = min(max(input_budget // per_row, 8), _round_up(rows_per_core, 8))
    if max_tile_rows is not None:
        tile_r = min(tile_r, max(int(max_tile_rows), 8))
    tile_r = max(8, (tile_r // 8) * 8)
    blocks_per_core = _cdiv(rows_per_core, tile_r)
    rows_pad = n_cores * blocks_per_core * tile_r
    E_pad = rows_pad * C

    # Flatten to the lane-dense view; zero-padded tail rows contribute nothing
    # ((p - g) == 0 regardless of scale).  Inputs keep their native dtype.
    p_flat = predictions.reshape(E)
    g_flat = ground_truth.reshape(E)
    if E_pad != E:
        p_flat = jnp.pad(p_flat, (0, E_pad - E))
        g_flat = jnp.pad(g_flat, (0, E_pad - E))
    p2 = p_flat.reshape(rows_pad, C)
    g2 = g_flat.reshape(rows_pad, C)

    row_map = lambda i, j: (i * blocks_per_core + j, 0)

    out = pl.pallas_call(
        _nmse_kernel,
        out_shape=jax.ShapeDtypeStruct((n_cores * 8, 128), jnp.float32),
        grid_spec=pltpu.PrefetchScalarGridSpec(
            num_scalar_prefetch=0,
            grid=(n_cores, blocks_per_core),
            in_specs=[
                pl.BlockSpec((tile_r, C), row_map),            # predictions tile (native dtype)
                pl.BlockSpec((tile_r, C), row_map),            # ground-truth tile (native dtype)
                pl.BlockSpec((1, C), lambda i, j: (0, 0)),     # resident per-lane scale
            ],
            out_specs=pl.BlockSpec((8, 128), lambda i, j: (i, 0)),   # per-core partial
            scratch_shapes=[pltpu.VMEM((tile_r, 1), jnp.float32)],   # per-row accumulator
        ),
        compiler_params=pltpu.CompilerParams(
            dimension_semantics=("parallel", "arbitrary"),
            vmem_limit_bytes=int(vmem_limit_bytes),
        ),
    )(p2, g2, scale)

    per_core = out[::8, 0]                                     # one partial per core
    return jnp.sum(per_core) / jnp.float32(M * F)              # mean over F then over (B,T,N)


def _reference(predictions, ground_truth, feature_variance, weights):
    p = predictions / feature_variance
    g = ground_truth / feature_variance
    out = ((p - g) ** 2).mean(-1)          # (B, T, N)
    out = out * weights                    # broadcast over last dim (N)
    return out.mean()


if __name__ == "__main__":
    # Shapes consistent with the module: features = 2 variable sets x 13 levels = 26.
    key = jax.random.PRNGKey(0)

    def run_case(B, T, N, F, key, **kw):
        k_pred, k_gt, k_fv = jax.random.split(key, 3)
        predictions = jax.random.normal(k_pred, (B, T, N, F), dtype=jnp.float32)
        ground_truth = jax.random.normal(k_gt, (B, T, N, F), dtype=jnp.float32)
        feature_variance = 0.5 + jax.random.uniform(k_fv, (F,), dtype=jnp.float32)
        lats = jnp.linspace(-88.0, 88.0, N, dtype=jnp.float32)
        weights = jnp.cos(lats * jnp.pi / 180.0)   # cos(lat * pi / 180) as in __init__

        loss = normalized_mse_loss(predictions, ground_truth, feature_variance, weights, **kw)
        loss = jax.block_until_ready(loss)
        ref = _reference(predictions, ground_truth, feature_variance, weights)
        assert jnp.allclose(loss, ref, rtol=1e-5, atol=1e-6), (loss, ref)

    # Aligned case (single grid step).
    run_case(B=2, T=2, N=32, F=26, key=jax.random.fold_in(key, 0))
    # Non-divisible period (N=30 -> q=32) exercises the zero-padding path.
    run_case(B=2, T=2, N=30, F=26, key=jax.random.fold_in(key, 1))
    # Multi-block accumulation + explicit 2-core partials (forced small tiles).
    run_case(B=4, T=4, N=32, F=26, key=jax.random.fold_in(key, 2),
             n_cores=2, max_tile_rows=8)

    print("KERNEL_OK")
</pallas_src>

<mosaic_0001>
module attributes {stable_mosaic.version = 11 : i64} {
  func.func @_nmse_kernel(%arg0: i32, %arg1: i32, %arg2: memref<8x1664xf32, #tpu.memory_space<vmem>>, %arg3: memref<8x1664xf32, #tpu.memory_space<vmem>>, %arg4: memref<1x1664xf32, #tpu.memory_space<vmem>>, %arg5: memref<8x128xf32, #tpu.memory_space<vmem>>, %arg6: memref<8x1xf32, #tpu.memory_space<vmem>>) attributes {dimension_semantics = [#tpu.dimension_semantics<parallel>, #tpu.dimension_semantics<arbitrary>], iteration_bounds = array<i64: 1, 1>, scalar_prefetch = 0 : i64, scratch_operands = 1 : i64, tpu.core_type = #tpu.core_type<tc>, window_params = [{transform_indices = @transform_0, window_bounds = array<i64: 8, 1664>}, {transform_indices = @transform_1, window_bounds = array<i64: 8, 1664>}, {pipeline_mode = #tpu.pipeline_mode<synchronous>, transform_indices = @transform_2, window_bounds = array<i64: 1, 1664>}, {transform_indices = @transform_3, window_bounds = array<i64: 8, 128>}]} {
    %c0_i32 = arith.constant 0 : i32
    %0 = arith.cmpi eq, %arg1, %c0_i32 : i32
    %1 = arith.extui %0 : i1 to i32
    %c0_i32_0 = arith.constant 0 : i32
    %2 = arith.cmpi ne, %1, %c0_i32_0 : i32
    scf.if %2 {
      %cst_12 = arith.constant 0.000000e+00 : f32
      %18 = vector.broadcast %cst_12 : f32 to vector<8x1xf32>
      %c0_13 = arith.constant 0 : index
      %c0_14 = arith.constant 0 : index
      %19 = vector.load %arg6[%c0_13, %c0_14] : memref<8x1xf32, #tpu.memory_space<vmem>>, vector<8x1xf32>
      tpu.vector_store %arg6[%c0_13, %c0_14], %18 {strides = array<i32>} : memref<8x1xf32, #tpu.memory_space<vmem>>, vector<8x1xf32>,
    } else {
    }
    %c0 = arith.constant 0 : index
    %c0_1 = arith.constant 0 : index
    %3 = vector.load %arg2[%c0, %c0_1] : memref<8x1664xf32, #tpu.memory_space<vmem>>, vector<8x1664xf32>
    %c0_2 = arith.constant 0 : index
    %c0_3 = arith.constant 0 : index
    %4 = vector.load %arg3[%c0_2, %c0_3] : memref<8x1664xf32, #tpu.memory_space<vmem>>, vector<8x1664xf32>
    %5 = arith.subf %3, %4 : vector<8x1664xf32>
    %6 = arith.mulf %5, %5 : vector<8x1664xf32>
    %c0_4 = arith.constant 0 : index
    %c0_5 = arith.constant 0 : index
    %7 = vector.load %arg4[%c0_4, %c0_5] : memref<1x1664xf32, #tpu.memory_space<vmem>>, vector<1x1664xf32>
    %8 = vector.broadcast %7 : vector<1x1664xf32> to vector<8x1664xf32>
    %9 = arith.mulf %6, %8 : vector<8x1664xf32>
    %c0_6 = arith.constant 0 : index
    %c0_7 = arith.constant 0 : index
    %10 = vector.load %arg6[%c0_6, %c0_7] : memref<8x1xf32, #tpu.memory_space<vmem>>, vector<8x1xf32>
    %cst = arith.constant dense<0.000000e+00> : vector<8xf32>
    %11 = vector.multi_reduction <add>, %9, %cst [1] : vector<8x1664xf32> to vector<8xf32>
    %12 = vector.shape_cast %11 : vector<8xf32> to vector<8x1xf32>
    %13 = arith.addf %10, %12 : vector<8x1xf32>
    %c0_8 = arith.constant 0 : index
    %c0_9 = arith.constant 0 : index
    %14 = vector.load %arg6[%c0_8, %c0_9] : memref<8x1xf32, #tpu.memory_space<vmem>>, vector<8x1xf32>
    tpu.vector_store %arg6[%c0_8, %c0_9], %13 {strides = array<i32>} : memref<8x1xf32, #tpu.memory_space<vmem>>, vector<8x1xf32>,
    %c0_i32_10 = arith.constant 0 : i32
    %15 = arith.cmpi eq, %arg1, %c0_i32_10 : i32
    %16 = arith.extui %15 : i1 to i32
    %c0_i32_11 = arith.constant 0 : i32
    %17 = arith.cmpi ne, %16, %c0_i32_11 : i32
    scf.if %17 {
      %c0_12 = arith.constant 0 : index
      %c0_13 = arith.constant 0 : index
      %18 = vector.load %arg6[%c0_12, %c0_13] : memref<8x1xf32, #tpu.memory_space<vmem>>, vector<8x1xf32>
      %cst_14 = arith.constant dense<0.000000e+00> : vector<1xf32>
      %19 = vector.multi_reduction <add>, %18, %cst_14 [0] : vector<8x1xf32> to vector<1xf32>
      %20 = vector.shape_cast %19 : vector<1xf32> to vector<1x1xf32>
      %21 = vector.shape_cast %20 : vector<1x1xf32> to vector<1x1xf32>
      %22 = vector.broadcast %21 : vector<1x1xf32> to vector<8x128xf32>
      %c0_15 = arith.constant 0 : index
      %c0_16 = arith.constant 0 : index
      %23 = vector.load %arg5[%c0_15, %c0_16] : memref<8x128xf32, #tpu.memory_space<vmem>>, vector<8x128xf32>
      tpu.vector_store %arg5[%c0_15, %c0_16], %22 {strides = array<i32>} : memref<8x128xf32, #tpu.memory_space<vmem>>, vector<8x128xf32>,
    } else {
    }
    return
  }
  func.func @transform_0(%arg0: i32, %arg1: i32) -> (i32, i32) {
    %c1_i32 = arith.constant 1 : i32
    %0 = arith.muli %arg0, %c1_i32 : i32
    %1 = arith.addi %0, %arg1 : i32
    %c0_i32 = arith.constant 0 : i32
    %c0_i32_0 = arith.constant 0 : i32
    return %1, %c0_i32 : i32, i32
  }
  func.func @transform_1(%arg0: i32, %arg1: i32) -> (i32, i32) {
    %c1_i32 = arith.constant 1 : i32
    %0 = arith.muli %arg0, %c1_i32 : i32
    %1 = arith.addi %0, %arg1 : i32
    %c0_i32 = arith.constant 0 : i32
    %c0_i32_0 = arith.constant 0 : i32
    return %1, %c0_i32 : i32, i32
  }
  func.func @transform_2(%arg0: i32, %arg1: i32) -> (i32, i32) {
    %c0_i32 = arith.constant 0 : i32
    %c0_i32_0 = arith.constant 0 : i32
    %c0_i32_1 = arith.constant 0 : i32
    return %c0_i32, %c0_i32_0 : i32, i32
  }
  func.func @transform_3(%arg0: i32, %arg1: i32) -> (i32, i32) {
    %c0_i32 = arith.constant 0 : i32
    %c0_i32_0 = arith.constant 0 : i32
    return %arg0, %c0_i32 : i32, i32
  }
}

</mosaic_0001>

<llo_original>
// kernel: tpu_custom_call.1
$region0: #{tpu_custom_call.1}
  #allocation0 [shape = 'u32[]', space=smem, size = 0x4, offset = 0x4, fixed_abs, tag = 'smem constant byte address 0x4 - core index']
  #allocation1 [shape = 'u32[144,128]{1,0:T(1,128)}', space=vmem, size = 0x12000, scoped, tag = 'internal scratch']
  #allocation2 [shape = 'f32[8,1]{1,0:T(8,128)}', space=vmem, size = 0x1000, scoped, tag = 'scratch operand']
  %s0 = inlined_call_operand.hbm [shape: f32[8,1664], index: 0, kind: input, shape index: {}]
  %s1 = inlined_call_operand.hbm [shape: f32[8,1664], index: 1, kind: input, shape index: {}]
  %s2 = inlined_call_operand.hbm [shape: f32[1,1664], index: 2, kind: input, shape index: {}]
  %s3 = inlined_call_operand.hbm [shape: f32[8,128], index: 3, kind: output, shape index: {}]
  %s4 = sld [smem:[#allocation0]]
  $region42: #{tpu_custom_call.1} parent=0
    _
  %s6 = ssub.s32 1, %s4
  %s7 = scalar_select 0, %s6, %s4
  $region1: #{tpu_custom_call.1} parent=0
    #allocation3 [shape = 'u8[53248]{0}', space=vmem, size = 0xd000, scoped, tag = 'input window, operand 0, single buffered']
    #allocation4 [shape = 's32[1]{0}', space=sflag, size = 0x4, scoped, tag = 'scoped memory for tpu_custom_call.1']
    #allocation5 [shape = 's32[1]{0}', space=sflag, size = 0x4, scoped, tag = 'scoped memory for tpu_custom_call.1']
    #allocation6 [shape = 'u8[53248]{0}', space=vmem, size = 0xd000, scoped, tag = 'input window, operand 1, single buffered']
    #allocation7 [shape = 's32[1]{0}', space=sflag, size = 0x4, scoped, tag = 'scoped memory for tpu_custom_call.1']
    #allocation8 [shape = 'u8[6656]{0}', space=vmem, size = 0x1c00, scoped, tag = 'input window, operand 2, single buffered']
    #allocation9 [shape = 'u8[4096]{0}', space=vmem, size = 0x1000, scoped, tag = 'output window, operand 0, single buffered']
    %8 = vsyncpa [#allocation4], 0
    %9 = vsyncpa [#allocation7], 0
    %10 = vsyncpa [#allocation5], 0
    // Predicated region
    $region2: #{tpu_custom_call.1} parent=1 // pred_check
      _
    $region3: #{tpu_custom_call.1} parent=1 // pred_check_branch
      %12 = sbr.rel (0) target = $region5
    $region4: #{tpu_custom_call.1} parent=1 // pred_region
      %s13 = sadd.s32 0, 0
      %s15 = ssub.s32 1664, 1664
      %16 = vsyncadd [#allocation4], %s15
      %s17 = smul.addr %s13, 13
      %s18 = smul.addr %s17, 128
      %s19 = scalar_lea.hbm %s0, %s18
      %s21 = sshll.u32 [#allocation3], 4
      %s22 = int_to_ptr.vmem [resolvable:$true] %s21
      %24 = dma.hbm_to_vmem [thread:$0]  %s19, 1664, %s22, [#allocation4]
    $region5: #{tpu_custom_call.1} parent=1 // pred_fallthru
      _
    // Predicated region
    $region6: #{tpu_custom_call.1} parent=1 // pred_check
      _
    $region7: #{tpu_custom_call.1} parent=1 // pred_check_branch
      %26 = sbr.rel (0) target = $region9
    $region8: #{tpu_custom_call.1} parent=1 // pred_region
      %s27 = sadd.s32 0, 0
      %s29 = ssub.s32 1664, 1664
      %30 = vsyncadd [#allocation7], %s29
      %s31 = smul.addr %s27, 13
      %s32 = smul.addr %s31, 128
      %s33 = scalar_lea.hbm %s1, %s32
      %s35 = sshll.u32 [#allocation6], 4
      %s36 = int_to_ptr.vmem [resolvable:$true] %s35
      %38 = dma.hbm_to_vmem [thread:$0]  %s33, 1664, %s36, [#allocation7]
    $region9: #{tpu_custom_call.1} parent=1 // pred_fallthru
      _
    // Predicated region
    $region10: #{tpu_custom_call.1} parent=1 // pred_check
      _
    $region11: #{tpu_custom_call.1} parent=1 // pred_check_branch
      %40 = sbr.rel (0) target = $region13
    $region12: #{tpu_custom_call.1} parent=1 // pred_region
      %s42 = ssub.s32 208, 208
      %43 = vsyncadd [#allocation7], %s42
      %s45 = sshll.u32 [#allocation8], 4
      %s46 = int_to_ptr.vmem [resolvable:$true] %s45
      %48 = dma.hbm_to_vmem [thread:$0]  %s2, 208, %s46, [#allocation7]
    $region13: #{tpu_custom_call.1} parent=1 // pred_fallthru
      _
    // Predicated region
    $region14: #{tpu_custom_call.1} parent=1 // pred_check
      _
    $region15: #{tpu_custom_call.1} parent=1 // pred_check_branch
      %50 = sbr.rel (0) target = $region17
    $region16: #{tpu_custom_call.1} parent=1 // pred_region
      %51 = dma.done [#allocation4], 1664
    $region17: #{tpu_custom_call.1} parent=1 // pred_fallthru
      _
    // Predicated region
    $region18: #{tpu_custom_call.1} parent=1 // pred_check
      _
    $region19: #{tpu_custom_call.1} parent=1 // pred_check_branch
      %53 = sbr.rel (0) target = $region21
    $region20: #{tpu_custom_call.1} parent=1 // pred_region
      %54 = dma.done [#allocation7], 1664
    $region21: #{tpu_custom_call.1} parent=1 // pred_fallthru
      _
    // Predicated region
    $region22: #{tpu_custom_call.1} parent=1 // pred_check
      _
    $region23: #{tpu_custom_call.1} parent=1 // pred_check_branch
      %56 = sbr.rel (0) target = $region25
    $region24: #{tpu_custom_call.1} parent=1 // pred_region
      %57 = dma.done [#allocation7], 208
    $region25: #{tpu_custom_call.1} parent=1 // pred_fallthru
      _
    %s58 = sadd.s32 0, 0
    %s59 = sadd.s32 0, 0
    %p60 = scmp.eq.s32.totalorder 0, 0
    // Predicated region
    $region26: #{tpu_custom_call.1} parent=1 // pred_check
      %p61 = pneg %p60
    $region27: #{tpu_custom_call.1} parent=1 // pred_check_branch
      %63 = sbr.rel (%p61) target = $region29
    $region28: #{tpu_custom_call.1} parent=1 // pred_region
      %vm64 = vcmask 7168
      %65 = vst.msk [vmem:[#allocation2] sm:$0xff] %vm64, 0.0
    $region29: #{tpu_custom_call.1} parent=1 // pred_fallthru
      _
    %v66 = vld [vmem:[#allocation3] sm:$0xff]
    %v67 = vld [vmem:[#allocation3 + $0x8] sm:$0xff]
    %v68 = vld [vmem:[#allocation3 + $0x10] sm:$0xff]
    %v69 = vld [vmem:[#allocation3 + $0x18] sm:$0xff]
    %v70 = vld [vmem:[#allocation3 + $0x20] sm:$0xff]
    %v71 = vld [vmem:[#allocation3 + $0x28] sm:$0xff]
    %v72 = vld [vmem:[#allocation3 + $0x30] sm:$0xff]
    %v73 = vld [vmem:[#allocation3 + $0x38] sm:$0xff]
    %v74 = vld [vmem:[#allocation3 + $0x40] sm:$0xff]
    %v75 = vld [vmem:[#allocation3 + $0x48] sm:$0xff]
    %v76 = vld [vmem:[#allocation3 + $0x50] sm:$0xff]
    %v77 = vld [vmem:[#allocation3 + $0x58] sm:$0xff]
    %v78 = vld [vmem:[#allocation3 + $0x60] sm:$0xff]
    %v79 = vld [vmem:[#allocation6] sm:$0xff]
    %v80 = vld [vmem:[#allocation6 + $0x8] sm:$0xff]
    %v81 = vld [vmem:[#allocation6 + $0x10] sm:$0xff]
    %v82 = vld [vmem:[#allocation6 + $0x18] sm:$0xff]
    %v83 = vld [vmem:[#allocation6 + $0x20] sm:$0xff]
    %v84 = vld [vmem:[#allocation6 + $0x28] sm:$0xff]
    %v85 = vld [vmem:[#allocation6 + $0x30] sm:$0xff]
    %v86 = vld [vmem:[#allocation6 + $0x38] sm:$0xff]
    %v87 = vld [vmem:[#allocation6 + $0x40] sm:$0xff]
    %v88 = vld [vmem:[#allocation6 + $0x48] sm:$0xff]
    %v89 = vld [vmem:[#allocation6 + $0x50] sm:$0xff]
    %v90 = vld [vmem:[#allocation6 + $0x58] sm:$0xff]
    %v91 = vld [vmem:[#allocation6 + $0x60] sm:$0xff]
    %v92 = vsub.f32 %v66, %v79
    %v93 = vsub.f32 %v67, %v80
    %v94 = vsub.f32 %v68, %v81
    %v95 = vsub.f32 %v69, %v82
    %v96 = vsub.f32 %v70, %v83
    %v97 = vsub.f32 %v71, %v84
    %v98 = vsub.f32 %v72, %v85
    %v99 = vsub.f32 %v73, %v86
    %v100 = vsub.f32 %v74, %v87
    %v101 = vsub.f32 %v75, %v88
    %v102 = vsub.f32 %v76, %v89
    %v103 = vsub.f32 %v77, %v90
    %v104 = vsub.f32 %v78, %v91
    %v105 = vmul.f32 %v92, %v92
    %v106 = vmul.f32 %v93, %v93
    %v107 = vmul.f32 %v94, %v94
    %v108 = vmul.f32 %v95, %v95
    %v109 = vmul.f32 %v96, %v96
    %v110 = vmul.f32 %v97, %v97
    %v111 = vmul.f32 %v98, %v98
    %v112 = vmul.f32 %v99, %v99
    %v113 = vmul.f32 %v100, %v100
    %v114 = vmul.f32 %v101, %v101
    %v115 = vmul.f32 %v102, %v102
    %v116 = vmul.f32 %v103, %v103
    %v117 = vmul.f32 %v104, %v104
    %v118 = vld [vmem:[#allocation8] sm:$0xff]
    %v119 = vld [vmem:[#allocation8 + $0x8] sm:$0x1f]
    %v122 = vlaneseq
    %v123 = vshrl.u32 %v122, 7
    %v124 = vsub.s32 0, %v123
    %v125 = vrot.slane %v118, %v124
    %v126 = vlaneseq
    %v127 = vshrl.u32 %v126, 7
    %v128 = vsub.s32 1, %v127
    %v129 = vrot.slane %v118, %v128
    %v130 = vlaneseq
    %v131 = vshrl.u32 %v130, 7
    %v132 = vsub.s32 2, %v131
    %v133 = vrot.slane %v118, %v132
    %v134 = vlaneseq
    %v135 = vshrl.u32 %v134, 7
    %v136 = vsub.s32 3, %v135
    %v137 = vrot.slane %v118, %v136
    %v138 = vlaneseq
    %v139 = vshrl.u32 %v138, 7
    %v140 = vsub.s32 4, %v139
    %v141 = vrot.slane %v118, %v140
    %v142 = vlaneseq
    %v143 = vshrl.u32 %v142, 7
    %v144 = vsub.s32 5, %v143
    %v145 = vrot.slane %v118, %v144
    %v146 = vlaneseq
    %v147 = vshrl.u32 %v146, 7
    %v148 = vsub.s32 6, %v147
    %v149 = vrot.slane %v118, %v148
    %v150 = vlaneseq
    %v151 = vshrl.u32 %v150, 7
    %v152 = vsub.s32 7, %v151
    %v153 = vrot.slane %v118, %v152
    %v154 = vlaneseq
    %v155 = vshrl.u32 %v154, 7
    %v156 = vsub.s32 0, %v155
    %v157 = vrot.slane %v119, %v156
    %v158 = vlaneseq
    %v159 = vshrl.u32 %v158, 7
    %v160 = vsub.s32 1, %v159
    %v161 = vrot.slane %v119, %v160
    %v162 = vlaneseq
    %v163 = vshrl.u32 %v162, 7
    %v164 = vsub.s32 2, %v163
    %v165 = vrot.slane %v119, %v164
    %v166 = vlaneseq
    %v167 = vshrl.u32 %v166, 7
    %v168 = vsub.s32 3, %v167
    %v169 = vrot.slane %v119, %v168
    %v170 = vlaneseq
    %v171 = vshrl.u32 %v170, 7
    %v172 = vsub.s32 4, %v171
    %v173 = vrot.slane %v119, %v172
    %v187 = vmul.f32 %v105, %v125
    %v188 = vmul.f32 %v106, %v129
    %v189 = vmul.f32 %v107, %v133
    %v190 = vmul.f32 %v108, %v137
    %v191 = vmul.f32 %v109, %v141
    %v192 = vmul.f32 %v110, %v145
    %v193 = vmul.f32 %v111, %v149
    %v194 = vmul.f32 %v112, %v153
    %v195 = vmul.f32 %v113, %v157
    %v196 = vmul.f32 %v114, %v161
    %v197 = vmul.f32 %v115, %v165
    %v198 = vmul.f32 %v116, %v169
    %v199 = vmul.f32 %v117, %v173
    %v200 = vld [vmem:[#allocation2] sm:$0xff]
    %v201 = vadd.f32 %v187, %v188
    %v202 = vadd.f32 %v201, %v189
    %v203 = vadd.f32 %v202, %v190
    %v204 = vadd.f32 %v203, %v191
    %v205 = vadd.f32 %v204, %v192
    %v206 = vadd.f32 %v205, %v193
    %v207 = vadd.f32 %v206, %v194
    %v208 = vadd.f32 %v207, %v195
    %v209 = vadd.f32 %v208, %v196
    %v210 = vadd.f32 %v209, %v197
    %v211 = vadd.f32 %v210, %v198
    %v212 = vadd.f32 %v211, %v199
    %213 = vadd.xlane.f32.xlu0 %v212
    %v214 = vpop.xlane.xlu0 %213
    %v215 = vadd.f32 %v200, %v214
    %vm216 = vcmask 7168
    %217 = vst.msk [vmem:[#allocation2] sm:$0xff] %vm216, %v215
    // Predicated region
    $region30: #{tpu_custom_call.1} parent=1 // pred_check
      %p218 = pneg %p60
    $region31: #{tpu_custom_call.1} parent=1 // pred_check_branch
      %220 = sbr.rel (%p218) target = $region33
    $region32: #{tpu_custom_call.1} parent=1 // pred_region
      %v221 = vld [vmem:[#allocation2] sm:$0xff]
      %v222 = vsel %vm216, %v221, 0.0
      %v223 = vrot.slane %v222, 4
      %v224 = vadd.f32 %v222, %v223
      %v225 = vrot.slane %v224, 2
      %v226 = vadd.f32 %v224, %v225
      %v227 = vrot.slane %v226, 1
      %v228 = vadd.f32 %v226, %v227
      %230 = vset.pattern.permute.xlu0 0
      %231 = vperm.xlu0 %230, %v228
      %v232 = vpop.permute.xlu0 %231
      %234 = vst [vmem:[#allocation9] sm:$0xff] %v232
    $region33: #{tpu_custom_call.1} parent=1 // pred_fallthru
      _
    // Predicated region
    $region34: #{tpu_custom_call.1} parent=1 // pred_check
      _
    $region35: #{tpu_custom_call.1} parent=1 // pred_check_branch
      %236 = sbr.rel (0) target = $region37
    $region36: #{tpu_custom_call.1} parent=1 // pred_region
      %s238 = ssub.s32 128, 128
      %239 = vsyncadd [#allocation5], %s238
      %s241 = sshll.u32 [#allocation9], 4
      %s242 = int_to_ptr.vmem [resolvable:$true] %s241
      %244 = dma.vmem_to_hbm [thread:$0]  %s242, 128, %s3, [#allocation5]
    $region37: #{tpu_custom_call.1} parent=1 // pred_fallthru
      _
    // Predicated region
    $region38: #{tpu_custom_call.1} parent=1 // pred_check
      _
    $region39: #{tpu_custom_call.1} parent=1 // pred_check_branch
      %246 = sbr.rel (0) target = $region41
    $region40: #{tpu_custom_call.1} parent=1 // pred_region
      %247 = dma.done [#allocation5], 128
    $region41: #{tpu_custom_call.1} parent=1 // pred_fallthru
      _
    %248 = vsyncpa [#allocation4], 1
    %249 = vsyncpa [#allocation7], 1
    %250 = vsyncpa [#allocation5], 1

</llo_original>
